<compile_context>
chip_gen: v7x
topology: tpu7x:2x2x1
jax: 0.10.0
libtpu: 0.0.40
codegen_flags: <defaults>
</compile_context>

<pallas_src>
import jax
import jax.numpy as jnp
from jax.experimental import pallas as pl
from jax.experimental.pallas import tpu as pltpu
import numpy as np

INPUT_DIMENSION = 100
HIDDEN_DIMENSION = 256
OUTPUT_DIMENSION = 200

DIN_PAD = 128                      # 100 -> 128 (lane-aligned, padded once at setup)
D1 = HIDDEN_DIMENSION * 2          # 512
D2 = HIDDEN_DIMENSION              # 256
D3 = HIDDEN_DIMENSION // 2         # 128
DOUT_PAD = 256                     # 200 -> 256 (lane-aligned)

# Packed-bias column offsets ([1, 1152] buffer) -- all 128-multiples.
B1_OFF, B2_OFF, B3_OFF, B4_OFF = 0, D1, D1 + D2, D1 + D2 + D3
BCAT_W = D1 + D2 + D3 + DOUT_PAD   # 1152

# Packed-weight row offsets for the W2/W3/W4 blob ([896, 256] bf16).
W2_OFF, W3_OFF, W4_OFF = 0, D1, D1 + D2
WCAT_ROWS = D1 + D2 + D3           # 896


def gcn4_kernel(a_ref, x_ref, w1_ref, wcat_ref, bcat_ref, o_ref):
    a = a_ref[...]                                                          # [N, N] f32

    # ---- Layer 1 (reassociated: A-contraction at width 128, then bf16 MXU matmul) ----
    ax = jnp.dot(a, x_ref[...], preferred_element_type=jnp.float32)        # [N, 128] f32
    h = jnp.dot(ax.astype(jnp.bfloat16), w1_ref[...],
                preferred_element_type=jnp.float32)                        # [N, 512] f32
    h = jnp.maximum(h + bcat_ref[:, B1_OFF:B1_OFF + D1], 0.0)

    # ---- Layer 2 (Din 512 > Dout 256: contract the weight first) ----
    w2 = wcat_ref[W2_OFF:W2_OFF + D1, :]                                    # [512, 256] bf16
    t = jnp.dot(h.astype(jnp.bfloat16), w2, preferred_element_type=jnp.float32)
    h = jnp.maximum(jnp.dot(a, t, preferred_element_type=jnp.float32)
                    + bcat_ref[:, B2_OFF:B2_OFF + D2], 0.0)                 # [N, 256]

    # ---- Layer 3 ----
    w3 = wcat_ref[W3_OFF:W3_OFF + D2, :D3]                                  # [256, 128] bf16
    t = jnp.dot(h.astype(jnp.bfloat16), w3, preferred_element_type=jnp.float32)
    h = jnp.maximum(jnp.dot(a, t, preferred_element_type=jnp.float32)
                    + bcat_ref[:, B3_OFF:B3_OFF + D3], 0.0)                 # [N, 128]

    # ---- Layer 4: only node N-1 is returned -> contract with A_hat's last row first ----
    n = a_ref.shape[0]
    a_last = a_ref[pl.ds(n - 1, 1), :]                                      # [1, N]
    r = jnp.dot(a_last, h, preferred_element_type=jnp.float32)              # [1, 128]
    w4 = wcat_ref[W4_OFF:W4_OFF + D3, :]                                    # [128, 256] bf16
    o_ref[...] = jnp.maximum(
        jnp.dot(r.astype(jnp.bfloat16), w4, preferred_element_type=jnp.float32)
        + bcat_ref[:, B4_OFF:B4_OFF + DOUT_PAD], 0.0)                       # [1, 256]


def node_only_global_forward(a_hat, x_pad, w1_bf, wcat_bf, bcat):
    """a_hat [N,N] f32, x_pad [N,128] f32, w1_bf [128,512] bf16, wcat_bf [896,256] bf16,
    bcat [1,1152] f32 -> [1, 200] f32 (last node's embedding)."""
    n = a_hat.shape[0]
    macs = (n * n * DIN_PAD + n * DIN_PAD * D1          # layer 1 (reassociated)
            + n * D1 * D2 + n * n * D2                  # layer 2
            + n * D2 * D3 + n * n * D3                  # layer 3
            + n * D3 + D3 * DOUT_PAD)                   # layer 4 (single row)
    bytes_accessed = (a_hat.size * 4 + x_pad.size * 4 + w1_bf.size * 2
                      + wcat_bf.size * 2 + bcat.size * 4 + DOUT_PAD * 4)
    vmem = lambda: pl.BlockSpec(memory_space=pltpu.MemorySpace.VMEM)
    out = pl.pallas_call(
        gcn4_kernel,
        out_shape=jax.ShapeDtypeStruct((1, DOUT_PAD), jnp.float32),
        in_specs=[vmem() for _ in range(5)],
        out_specs=vmem(),
        cost_estimate=pl.CostEstimate(flops=2 * macs, transcendentals=0,
                                      bytes_accessed=bytes_accessed),
    )(a_hat, x_pad, w1_bf, wcat_bf, bcat)
    return out[:, :OUTPUT_DIMENSION]


def pack_params(params):
    """One-time producer step: bf16 weights, lane/sublane padding, operand packing."""
    (w1, b1), (w2, b2), (w3, b3), (w4, b4) = params
    # W1: rows padded 100 -> 128 (exact: padded rows multiply padded-zero x columns).
    w1_bf = jnp.pad(w1, ((0, DIN_PAD - INPUT_DIMENSION), (0, 0))).astype(jnp.bfloat16)
    # W2/W3/W4 packed into one [896, 256] bf16 blob (tile-aligned sub-blocks).
    wcat = jnp.zeros((WCAT_ROWS, DOUT_PAD), jnp.bfloat16)
    wcat = wcat.at[W2_OFF:W2_OFF + D1, :D2].set(w2.astype(jnp.bfloat16))
    wcat = wcat.at[W3_OFF:W3_OFF + D2, :D3].set(w3.astype(jnp.bfloat16))
    wcat = wcat.at[W4_OFF:W4_OFF + D3, :OUTPUT_DIMENSION].set(w4.astype(jnp.bfloat16))
    # Biases packed into one [1, 1152] f32 row (epilogue stays f32).
    bcat = jnp.zeros((1, BCAT_W), jnp.float32)
    bcat = bcat.at[:, B1_OFF:B1_OFF + D1].set(b1)
    bcat = bcat.at[:, B2_OFF:B2_OFF + D2].set(b2)
    bcat = bcat.at[:, B3_OFF:B3_OFF + D3].set(b3)
    bcat = bcat.at[:, B4_OFF:B4_OFF + OUTPUT_DIMENSION].set(b4)
    return w1_bf, wcat, bcat


def build_gcn_adj(edge_index, num_nodes):
    """Dense A_hat = D^{-1/2} (A + I) D^{-1/2} (PyG GCNConv sym norm with self-loops)."""
    self_loops = jnp.arange(num_nodes, dtype=edge_index.dtype)
    row = jnp.concatenate([edge_index[0], self_loops])   # source
    col = jnp.concatenate([edge_index[1], self_loops])   # target
    ones = jnp.ones(row.shape, jnp.float32)
    deg = jnp.zeros((num_nodes,), jnp.float32).at[col].add(ones)
    dinv = jnp.where(deg > 0, jax.lax.rsqrt(jnp.maximum(deg, 1e-12)), 0.0)
    w = dinv[row] * dinv[col]
    # aggregate at the target node: A_hat[t, s] = norm(s -> t)
    return jnp.zeros((num_nodes, num_nodes), jnp.float32).at[col, row].add(w)


if __name__ == "__main__":
    key = jax.random.PRNGKey(0)
    keys = jax.random.split(key, 8)

    N, E = 16, 32

    # Random undirected edges (no self loops), stored as directed pairs both ways.
    src = jax.random.randint(keys[0], (E,), 0, N)
    off = 1 + jax.random.randint(keys[1], (E,), 0, N - 1)
    dst = (src + off) % N
    edge_index = jnp.stack(
        [jnp.concatenate([src, dst]), jnp.concatenate([dst, src])], axis=0
    ).astype(jnp.int32)                                                 # [2, 64]

    x = jax.random.normal(keys[2], (N, INPUT_DIMENSION), jnp.float32)   # [16, 100]

    # Glorot weights, zero biases (GCNConv default reset).
    dims = [(INPUT_DIMENSION, D1), (D1, D2), (D2, D3), (D3, OUTPUT_DIMENSION)]
    params = []
    for i, (din, dout) in enumerate(dims):
        limit = float(np.sqrt(6.0 / (din + dout)))
        w = jax.random.uniform(keys[3 + i], (din, dout), jnp.float32, -limit, limit)
        b = jnp.zeros((1, dout), jnp.float32)
        params.append((w, b))

    a_hat = build_gcn_adj(edge_index, N)

    # One-time producer-side prep: lane pad of x, bf16 + packed weights/biases.
    x_pad = jnp.pad(x, ((0, 0), (0, DIN_PAD - INPUT_DIMENSION)))        # [16, 128]
    w1_bf, wcat_bf, bcat = pack_params(params)

    forward = jax.jit(node_only_global_forward)
    out = forward(a_hat, x_pad, w1_bf, wcat_bf, bcat)
    out = jax.block_until_ready(out)

    # Plain-JAX f32 reference (unpadded, un-reassociated) for self-check.
    h = x
    for (w, b) in params:
        h = jnp.maximum(a_hat @ (h @ w) + b, 0.0)
    ref = h[-1:, :]                                                     # [1, 200]

    assert out.shape == (1, OUTPUT_DIMENSION)
    # bf16 MXU operands (f32 accumulation) -> loosened tolerance vs the f32 reference.
    assert np.allclose(np.asarray(out), np.asarray(ref), rtol=2e-2, atol=2e-2)

    print("KERNEL_OK")
</pallas_src>

<mosaic_0001>
module attributes {stable_mosaic.version = 11 : i64} {
  func.func @gcn4_kernel(%arg0: memref<16x16xf32, #tpu.memory_space<vmem>>, %arg1: memref<16x128xf32, #tpu.memory_space<vmem>>, %arg2: memref<128x512xbf16, #tpu.memory_space<vmem>>, %arg3: memref<896x256xbf16, #tpu.memory_space<vmem>>, %arg4: memref<1x1152xf32, #tpu.memory_space<vmem>>, %arg5: memref<1x256xf32, #tpu.memory_space<vmem>>) attributes {dimension_semantics = [], scalar_prefetch = 0 : i64, scratch_operands = 0 : i64, tpu.core_type = #tpu.core_type<tc>} {
    %c0 = arith.constant 0 : index
    %c0_0 = arith.constant 0 : index
    %0 = vector.load %arg0[%c0, %c0_0] : memref<16x16xf32, #tpu.memory_space<vmem>>, vector<16x16xf32>
    %c0_1 = arith.constant 0 : index
    %c0_2 = arith.constant 0 : index
    %1 = vector.load %arg1[%c0_1, %c0_2] : memref<16x128xf32, #tpu.memory_space<vmem>>, vector<16x128xf32>
    %cst = arith.constant dense<0.000000e+00> : vector<16x128xf32>
    %2 = tpu.matmul %0, %1, %cst {dimension_numbers = #tpu.dot_dimension_numbers<[1], [0], [0], [1], [0, 0, 1, 1], [], []>} : vector<16x16xf32>, vector<16x128xf32>, vector<16x128xf32> -> vector<16x128xf32>
    %3 = arith.truncf %2 : vector<16x128xf32> to vector<16x128xbf16>
    %c0_3 = arith.constant 0 : index
    %c0_4 = arith.constant 0 : index
    %4 = vector.load %arg2[%c0_3, %c0_4] : memref<128x512xbf16, #tpu.memory_space<vmem>>, vector<128x512xbf16>
    %cst_5 = arith.constant dense<0.000000e+00> : vector<16x512xf32>
    %5 = tpu.matmul %3, %4, %cst_5 {dimension_numbers = #tpu.dot_dimension_numbers<[1], [0], [0], [1], [0, 0, 1, 1], [], []>} : vector<16x128xbf16>, vector<128x512xbf16>, vector<16x512xf32> -> vector<16x512xf32>
    %c0_6 = arith.constant 0 : index
    %c0_7 = arith.constant 0 : index
    %6 = vector.load %arg4[%c0_6, %c0_7] : memref<1x1152xf32, #tpu.memory_space<vmem>>, vector<1x512xf32>
    %7 = vector.broadcast %6 : vector<1x512xf32> to vector<16x512xf32>
    %8 = arith.addf %5, %7 : vector<16x512xf32>
    %cst_8 = arith.constant 0.000000e+00 : f32
    %9 = vector.broadcast %cst_8 : f32 to vector<16x512xf32>
    %10 = arith.maximumf %8, %9 : vector<16x512xf32>
    %c0_9 = arith.constant 0 : index
    %c0_10 = arith.constant 0 : index
    %11 = vector.load %arg3[%c0_9, %c0_10] : memref<896x256xbf16, #tpu.memory_space<vmem>>, vector<512x256xbf16>
    %12 = arith.truncf %10 : vector<16x512xf32> to vector<16x512xbf16>
    %cst_11 = arith.constant dense<0.000000e+00> : vector<16x256xf32>
    %13 = tpu.matmul %12, %11, %cst_11 {dimension_numbers = #tpu.dot_dimension_numbers<[1], [0], [0], [1], [0, 0, 1, 1], [], []>} : vector<16x512xbf16>, vector<512x256xbf16>, vector<16x256xf32> -> vector<16x256xf32>
    %cst_12 = arith.constant dense<0.000000e+00> : vector<16x256xf32>
    %14 = tpu.matmul %0, %13, %cst_12 {dimension_numbers = #tpu.dot_dimension_numbers<[1], [0], [0], [1], [0, 0, 1, 1], [], []>} : vector<16x16xf32>, vector<16x256xf32>, vector<16x256xf32> -> vector<16x256xf32>
    %c0_13 = arith.constant 0 : index
    %c512 = arith.constant 512 : index
    %15 = vector.load %arg4[%c0_13, %c512] : memref<1x1152xf32, #tpu.memory_space<vmem>>, vector<1x256xf32>
    %16 = vector.broadcast %15 : vector<1x256xf32> to vector<16x256xf32>
    %17 = arith.addf %14, %16 : vector<16x256xf32>
    %cst_14 = arith.constant 0.000000e+00 : f32
    %18 = vector.broadcast %cst_14 : f32 to vector<16x256xf32>
    %19 = arith.maximumf %17, %18 : vector<16x256xf32>
    %c512_15 = arith.constant 512 : index
    %c0_16 = arith.constant 0 : index
    %20 = vector.load %arg3[%c512_15, %c0_16] : memref<896x256xbf16, #tpu.memory_space<vmem>>, vector<256x128xbf16>
    %21 = arith.truncf %19 : vector<16x256xf32> to vector<16x256xbf16>
    %cst_17 = arith.constant dense<0.000000e+00> : vector<16x128xf32>
    %22 = tpu.matmul %21, %20, %cst_17 {dimension_numbers = #tpu.dot_dimension_numbers<[1], [0], [0], [1], [0, 0, 1, 1], [], []>} : vector<16x256xbf16>, vector<256x128xbf16>, vector<16x128xf32> -> vector<16x128xf32>
    %cst_18 = arith.constant dense<0.000000e+00> : vector<16x128xf32>
    %23 = tpu.matmul %0, %22, %cst_18 {dimension_numbers = #tpu.dot_dimension_numbers<[1], [0], [0], [1], [0, 0, 1, 1], [], []>} : vector<16x16xf32>, vector<16x128xf32>, vector<16x128xf32> -> vector<16x128xf32>
    %c0_19 = arith.constant 0 : index
    %c768 = arith.constant 768 : index
    %24 = vector.load %arg4[%c0_19, %c768] : memref<1x1152xf32, #tpu.memory_space<vmem>>, vector<1x128xf32>
    %25 = vector.broadcast %24 : vector<1x128xf32> to vector<16x128xf32>
    %26 = arith.addf %23, %25 : vector<16x128xf32>
    %cst_20 = arith.constant 0.000000e+00 : f32
    %27 = vector.broadcast %cst_20 : f32 to vector<16x128xf32>
    %28 = arith.maximumf %26, %27 : vector<16x128xf32>
    %c15 = arith.constant 15 : index
    %c0_21 = arith.constant 0 : index
    %29 = vector.load %arg0[%c15, %c0_21] : memref<16x16xf32, #tpu.memory_space<vmem>>, vector<1x16xf32>
    %cst_22 = arith.constant dense<0.000000e+00> : vector<1x128xf32>
    %30 = tpu.matmul %29, %28, %cst_22 {dimension_numbers = #tpu.dot_dimension_numbers<[1], [0], [0], [1], [0, 0, 1, 1], [], []>} : vector<1x16xf32>, vector<16x128xf32>, vector<1x128xf32> -> vector<1x128xf32>
    %c768_23 = arith.constant 768 : index
    %c0_24 = arith.constant 0 : index
    %31 = vector.load %arg3[%c768_23, %c0_24] : memref<896x256xbf16, #tpu.memory_space<vmem>>, vector<128x256xbf16>
    %32 = arith.truncf %30 : vector<1x128xf32> to vector<1x128xbf16>
    %cst_25 = arith.constant dense<0.000000e+00> : vector<1x256xf32>
    %33 = tpu.matmul %32, %31, %cst_25 {dimension_numbers = #tpu.dot_dimension_numbers<[1], [0], [0], [1], [0, 0, 1, 1], [], []>} : vector<1x128xbf16>, vector<128x256xbf16>, vector<1x256xf32> -> vector<1x256xf32>
    %c0_26 = arith.constant 0 : index
    %c896 = arith.constant 896 : index
    %34 = vector.load %arg4[%c0_26, %c896] : memref<1x1152xf32, #tpu.memory_space<vmem>>, vector<1x256xf32>
    %35 = arith.addf %33, %34 : vector<1x256xf32>
    %cst_27 = arith.constant 0.000000e+00 : f32
    %36 = vector.broadcast %cst_27 : f32 to vector<1x256xf32>
    %37 = arith.maximumf %35, %36 : vector<1x256xf32>
    %c0_28 = arith.constant 0 : index
    %c0_29 = arith.constant 0 : index
    %38 = vector.load %arg5[%c0_28, %c0_29] : memref<1x256xf32, #tpu.memory_space<vmem>>, vector<1x256xf32>
    tpu.vector_store %arg5[%c0_28, %c0_29], %37 {strides = array<i32>} : memref<1x256xf32, #tpu.memory_space<vmem>>, vector<1x256xf32>,
    return
  }
}

</mosaic_0001>

<llo_original>
// kernel: node_only_global_forward.1
$region0: #{node_only_global_forward.1}
  #allocation0 [shape = 'u32[]', space=smem, size = 0x4, offset = 0x4, fixed_abs, tag = 'smem constant byte address 0x4 - core index']
  #allocation1 [shape = 'u32[144,128]{1,0:T(1,128)}', space=vmem, size = 0x12000, scoped, tag = 'internal scratch']
  %s0 = inlined_call_operand.hbm [shape: f32[16,16], index: 0, kind: input, shape index: {}]
  %s1 = inlined_call_operand.hbm [shape: f32[16,128], index: 1, kind: input, shape index: {}]
  %s2 = inlined_call_operand.hbm [shape: bf16[128,512], index: 2, kind: input, shape index: {}]
  %s3 = inlined_call_operand.hbm [shape: bf16[896,256], index: 3, kind: input, shape index: {}]
  %s4 = inlined_call_operand.vmem [shape: f32[1,1152], index: 4, kind: input, shape index: {}]
  %s5 = inlined_call_operand.hbm [shape: f32[1,256], index: 5, kind: output, shape index: {}]
  %s6 = sld [smem:[#allocation0]]
  $region46: #{node_only_global_forward.1} parent=0
    _
  %s8 = ssub.s32 1, %s6
  %s9 = scalar_select 0, %s8, %s6
  $region1: #{node_only_global_forward.1} parent=0
    #allocation2 [shape = 'u8[8192]{0}', space=vmem, size = 0x2000, scoped, tag = 'input window, operand 0, single buffered']
    #allocation3 [shape = 's32[1]{0}', space=sflag, size = 0x4, scoped, tag = 'scoped memory for node_only_global_forward.1']
    #allocation4 [shape = 's32[1]{0}', space=sflag, size = 0x4, scoped, tag = 'scoped memory for node_only_global_forward.1']
    #allocation5 [shape = 'u8[8192]{0}', space=vmem, size = 0x2000, scoped, tag = 'input window, operand 1, single buffered']
    #allocation6 [shape = 's32[1]{0}', space=sflag, size = 0x4, scoped, tag = 'scoped memory for node_only_global_forward.1']
    #allocation7 [shape = 'u8[131072]{0}', space=vmem, size = 0x20000, scoped, tag = 'input window, operand 2, single buffered']
    #allocation8 [shape = 'u8[458752]{0}', space=vmem, size = 0x70000, scoped, tag = 'input window, operand 3, single buffered']
    #allocation9 [shape = 's32[1]{0}', space=sflag, size = 0x4, scoped, tag = 'scoped memory for node_only_global_forward.1']
    #allocation10 [shape = 'u8[1024]{0}', space=vmem, size = 0x400, scoped, tag = 'output window, operand 0, single buffered']
    %10 = vsyncpa [#allocation3], 0
    %11 = vsyncpa [#allocation6], 0
    %12 = vsyncpa [#allocation9], 0
    %13 = vsyncpa [#allocation4], 0
    // Predicated region
    $region2: #{node_only_global_forward.1} parent=1 // pred_check
      _
    $region3: #{node_only_global_forward.1} parent=1 // pred_check_branch
      %15 = sbr.rel (0) target = $region5
    $region4: #{node_only_global_forward.1} parent=1 // pred_region
      %s17 = ssub.s32 256, 256
      %18 = vsyncadd [#allocation3], %s17
      %s19 = sshll.u32 [#allocation2], 4
      %s20 = int_to_ptr.vmem [resolvable:$true] %s19
      %25 = dma.hbm_to_vmem [thread:$0]  %s0, 256, %s20, [#allocation3], 128, 128, 8
    $region5: #{node_only_global_forward.1} parent=1 // pred_fallthru
      _
    // Predicated region
    $region6: #{node_only_global_forward.1} parent=1 // pred_check
      _
    $region7: #{node_only_global_forward.1} parent=1 // pred_check_branch
      %27 = sbr.rel (0) target = $region9
    $region8: #{node_only_global_forward.1} parent=1 // pred_region
      %s29 = ssub.s32 256, 256
      %30 = vsyncadd [#allocation6], %s29
      %s31 = sshll.u32 [#allocation5], 4
      %s32 = int_to_ptr.vmem [resolvable:$true] %s31
      %37 = dma.hbm_to_vmem [thread:$0]  %s1, 256, %s32, [#allocation6], 128, 128, 8
    $region9: #{node_only_global_forward.1} parent=1 // pred_fallthru
      _
    // Predicated region
    $region10: #{node_only_global_forward.1} parent=1 // pred_check
      _
    $region11: #{node_only_global_forward.1} parent=1 // pred_check_branch
      %39 = sbr.rel (0) target = $region13
    $region12: #{node_only_global_forward.1} parent=1 // pred_region
      %s41 = ssub.s32 4096, 4096
      %42 = vsyncadd [#allocation6], %s41
      %s43 = sshll.u32 [#allocation7], 4
      %s44 = int_to_ptr.vmem [resolvable:$true] %s43
      %49 = dma.hbm_to_vmem [thread:$0]  %s2, 4096, %s44, [#allocation6], 256, 256, 16
    $region13: #{node_only_global_forward.1} parent=1 // pred_fallthru
      _
    // Predicated region
    $region14: #{node_only_global_forward.1} parent=1 // pred_check
      _
    $region15: #{node_only_global_forward.1} parent=1 // pred_check_branch
      %51 = sbr.rel (0) target = $region17
    $region16: #{node_only_global_forward.1} parent=1 // pred_region
      %s53 = ssub.s32 14336, 14336
      %54 = vsyncadd [#allocation9], %s53
      %s55 = sshll.u32 [#allocation8], 4
      %s56 = int_to_ptr.vmem [resolvable:$true] %s55
      %61 = dma.hbm_to_vmem [thread:$0]  %s3, 14336, %s56, [#allocation9], 128, 128, 8
    $region17: #{node_only_global_forward.1} parent=1 // pred_fallthru
      _
    // Predicated region
    $region18: #{node_only_global_forward.1} parent=1 // pred_check
      _
    $region19: #{node_only_global_forward.1} parent=1 // pred_check_branch
      %63 = sbr.rel (0) target = $region21
    $region20: #{node_only_global_forward.1} parent=1 // pred_region
      _
    $region21: #{node_only_global_forward.1} parent=1 // pred_fallthru
      _
    // Predicated region
    $region22: #{node_only_global_forward.1} parent=1 // pred_check
      _
    $region23: #{node_only_global_forward.1} parent=1 // pred_check_branch
      %65 = sbr.rel (0) target = $region25
    $region24: #{node_only_global_forward.1} parent=1 // pred_region
      %66 = dma.done [#allocation3], 256
    $region25: #{node_only_global_forward.1} parent=1 // pred_fallthru
      _
    // Predicated region
    $region26: #{node_only_global_forward.1} parent=1 // pred_check
      _
    $region27: #{node_only_global_forward.1} parent=1 // pred_check_branch
      %68 = sbr.rel (0) target = $region29
    $region28: #{node_only_global_forward.1} parent=1 // pred_region
      %69 = dma.done [#allocation6], 256
    $region29: #{node_only_global_forward.1} parent=1 // pred_fallthru
      _
    // Predicated region
    $region30: #{node_only_global_forward.1} parent=1 // pred_check
      _
    $region31: #{node_only_global_forward.1} parent=1 // pred_check_branch
      %71 = sbr.rel (0) target = $region33
    $region32: #{node_only_global_forward.1} parent=1 // pred_region
      %72 = dma.done [#allocation6], 4096
    $region33: #{node_only_global_forward.1} parent=1 // pred_fallthru
      _
    // Predicated region
    $region34: #{node_only_global_forward.1} parent=1 // pred_check
      _
    $region35: #{node_only_global_forward.1} parent=1 // pred_check_branch
      %74 = sbr.rel (0) target = $region37
    $region36: #{node_only_global_forward.1} parent=1 // pred_region
      %75 = dma.done [#allocation9], 14336
    $region37: #{node_only_global_forward.1} parent=1 // pred_fallthru
      _
    %v77 = vld [vmem:[#allocation2] sm:$0xff]
    %v78 = vld [vmem:[#allocation2 + $0x8] sm:$0xff]
    %v79 = vld [vmem:[#allocation5] sm:$0xff]
    %v80 = vld [vmem:[#allocation5 + $0x8] sm:$0xff]
    %vm81 = vcmask 130048
    %v83 = vsel %vm81, %v77, 0
    %v86 = vsel %vm81, %v78, 0
    %88 = vmatprep.subr.mxu0 0.0
    %89 = vmatpush1.msra.mxu0 %v79
    %90 = vmatprep.subr.mxu0 0.0
    %91 = vmatpush1.msra.mxu0 %v80
    %92 = vmatprep.subr.mxu0 0.0
    %93 = vmatpush1.msra.mxu0 0.0
    %94 = vmatprep.subr.mxu0 0.0
    %95 = vmatpush1.msra.mxu0 0.0
    %96 = vmatprep.subr.mxu0 0.0
    %97 = vmatpush1.msra.mxu0 0.0
    %98 = vmatprep.subr.mxu0 0.0
    %99 = vmatpush1.msra.mxu0 0.0
    %100 = vmatprep.subr.mxu0 0.0
    %101 = vmatpush1.msra.mxu0 0.0
    %102 = vmatprep.subr.mxu0 0.0
    %103 = vmatpush1.msra.mxu0 0.0
    %104 = vmatprep.subr.mxu0 0.0
    %105 = vmatpush1.msra.mxu0 0.0
    %106 = vmatprep.subr.mxu0 0.0
    %107 = vmatpush1.msra.mxu0 0.0
    %108 = vmatprep.subr.mxu0 0.0
    %109 = vmatpush1.msra.mxu0 0.0
    %110 = vmatprep.subr.mxu0 0.0
    %111 = vmatpush1.msra.mxu0 0.0
    %112 = vmatprep.subr.mxu0 0.0
    %113 = vmatpush1.msra.mxu0 0.0
    %114 = vmatprep.subr.mxu0 0.0
    %115 = vmatpush1.msra.mxu0 0.0
    %116 = vmatprep.subr.mxu0 0.0
    %117 = vmatpush1.msra.mxu0 0.0
    %118 = vmatprep.subr.mxu0 0.0
    %119 = vmatpush1.msra.mxu0 0.0
    %120 = vmatprep.subr.mxu0 0.0
    %121 = vmatpush1.msra.mxu0 0.0
    %122 = vmatprep.subr.mxu0 0.0
    %123 = vmatpush1.msra.mxu0 0.0
    %124 = vmatprep.subr.mxu0 0.0
    %125 = vmatpush1.msra.mxu0 0.0
    %126 = vmatprep.subr.mxu0 0.0
    %127 = vmatpush1.msra.mxu0 0.0
    %128 = vmatprep.subr.mxu0 0.0
    %129 = vmatpush1.msra.mxu0 0.0
    %130 = vmatprep.subr.mxu0 0.0
    %131 = vmatpush1.msra.mxu0 0.0
    %132 = vmatprep.subr.mxu0 0.0
    %133 = vmatpush1.msra.mxu0 0.0
    %134 = vmatprep.subr.mxu0 0.0
    %135 = vmatpush1.msra.mxu0 0.0
    %136 = vmatprep.subr.mxu0 0.0
    %137 = vmatpush1.msra.mxu0 0.0
    %138 = vmatprep.subr.mxu0 0.0
    %139 = vmatpush1.msra.mxu0 0.0
    %140 = vmatprep.subr.mxu0 0.0
    %141 = vmatpush1.msra.mxu0 0.0
    %142 = vmatprep.subr.mxu0 0.0
    %143 = vmatpush1.msra.mxu0 0.0
    %144 = vmatprep.subr.mxu0 0.0
    %145 = vmatpush1.msra.mxu0 0.0
    %146 = vmatprep.subr.mxu0 0.0
    %147 = vmatpush1.msra.mxu0 0.0
    %148 = vmatprep.subr.mxu0 0.0
    %149 = vmatpush1.msra.mxu0 0.0
    %150 = vmatprep.subr.mxu0 0.0
    %151 = vmatpush1.msra.mxu0 0.0
    %152 = vmatprep.mubr.f32.mxu0 0.0
    %153 = vmatmul.mubr.f32.gmra.mrb[0].mxu0 %v83
    %v154 = vpop.f32.mrb[0].mxu0
    %v155 = vadd.f32 0.0, %v154
    %v156 = vpop.f32.mrb[0].mxu0
    %157 = vmatprep.mubr.f32.mxu0 0.0
    %158 = vmatmul.mubr.f32.gmra.mrb[0].mxu0 %v86
    %v159 = vpop.f32.mrb[0].mxu0
    %v160 = vadd.f32 0.0, %v159
    %v161 = vpop.f32.mrb[0].mxu0
    %162 = vdwg.mxu0
    %v163 = vpack.c.bf16 %v160, %v155
    %v164 = vld [vmem:[#allocation7] sm:$0xff]
    %v165 = vld [vmem:[#allocation7 + $0x8] sm:$0xff]
    %v166 = vld [vmem:[#allocation7 + $0x10] sm:$0xff]
    %v167 = vld [vmem:[#allocation7 + $0x18] sm:$0xff]
    %v168 = vld [vmem:[#allocation7 + $0x20] sm:$0xff]
    %v169 = vld [vmem:[#allocation7 + $0x28] sm:$0xff]
    %v170 = vld [vmem:[#allocation7 + $0x30] sm:$0xff]
    %v171 = vld [vmem:[#allocation7 + $0x38] sm:$0xff]
    %v172 = vld [vmem:[#allocation7 + $0x40] sm:$0xff]
    %v173 = vld [vmem:[#allocation7 + $0x48] sm:$0xff]
    %v174 = vld [vmem:[#allocation7 + $0x50] sm:$0xff]
    %v175 = vld [vmem:[#allocation7 + $0x58] sm:$0xff]
    %v176 = vld [vmem:[#allocation7 + $0x60] sm:$0xff]
    %v177 = vld [vmem:[#allocation7 + $0x68] sm:$0xff]
    %v178 = vld [vmem:[#allocation7 + $0x70] sm:$0xff]
    %v179 = vld [vmem:[#allocation7 + $0x78] sm:$0xff]
    %v180 = vld [vmem:[#allocation7 + $0x80] sm:$0xff]
    %v181 = vld [vmem:[#allocation7 + $0x88] sm:$0xff]
    %v182 = vld [vmem:[#allocation7 + $0x90] sm:$0xff]
    %v183 = vld [vmem:[#allocation7 + $0x98] sm:$0xff]
    %v184 = vld [vmem:[#allocation7 + $0xa0] sm:$0xff]
    %v185 = vld [vmem:[#allocation7 + $0xa8] sm:$0xff]
    %v186 = vld [vmem:[#allocation7 + $0xb0] sm:$0xff]
    %v187 = vld [vmem:[#allocation7 + $0xb8] sm:$0xff]
    %v188 = vld [vmem:[#allocation7 + $0xc0] sm:$0xff]
    %v189 = vld [vmem:[#allocation7 + $0xc8] sm:$0xff]
    %v190 = vld [vmem:[#allocation7 + $0xd0] sm:$0xff]
    %v191 = vld [vmem:[#allocation7 + $0xd8] sm:$0xff]
    %v192 = vld [vmem:[#allocation7 + $0xe0] sm:$0xff]
    %v193 = vld [vmem:[#allocation7 + $0xe8] sm:$0xff]
    %v194 = vld [vmem:[#allocation7 + $0xf0] sm:$0xff]
    %v195 = vld [vmem:[#allocation7 + $0xf8] sm:$0xff]
    %v196 = vld [vmem:[%s4] sm:$0xf]
    %v198 = vlaneseq
    %v199 = vshrl.u32 %v198, 7
    %v200 = vsub.s32 0, %v199
    %v201 = vrot.slane %v196, %v200
    %v202 = vlaneseq
    %v203 = vshrl.u32 %v202, 7
    %v204 = vsub.s32 1, %v203
    %v205 = vrot.slane %v196, %v204
    %v206 = vlaneseq
    %v207 = vshrl.u32 %v206, 7
    %v208 = vsub.s32 2, %v207
    %v209 = vrot.slane %v196, %v208
    %v210 = vlaneseq
    %v211 = vshrl.u32 %v210, 7
    %v212 = vsub.s32 3, %v211
    %v213 = vrot.slane %v196, %v212
    %v250 = vunpack.c.l.b16 %v164
    %v251 = vunpack.c.h.b16 %v164
    %v252 = vunpack.c.l.b16 %v165
    %v253 = vunpack.c.h.b16 %v165
    %v254 = vunpack.c.l.b16 %v166
    %v255 = vunpack.c.h.b16 %v166
    %v256 = vunpack.c.l.b16 %v167
    %v257 = vunpack.c.h.b16 %v167
    %v258 = vunpack.c.l.b16 %v168
    %v259 = vunpack.c.h.b16 %v168
    %v260 = vunpack.c.l.b16 %v169
    %v261 = vunpack.c.h.b16 %v169
    %v262 = vunpack.c.l.b16 %v170
    %v263 = vunpack.c.h.b16 %v170
    %v264 = vunpack.c.l.b16 %v171
    %v265 = vunpack.c.h.b16 %v171
    %v266 = vunpack.c.l.b16 %v172
    %v267 = vunpack.c.h.b16 %v172
    %v268 = vunpack.c.l.b16 %v173
    %v269 = vunpack.c.h.b16 %v173
    %v270 = vunpack.c.l.b16 %v174
    %v271 = vunpack.c.h.b16 %v174
    %v272 = vunpack.c.l.b16 %v175
    %v273 = vunpack.c.h.b16 %v175
    %v274 = vunpack.c.l.b16 %v176
    %v275 = vunpack.c.h.b16 %v176
    %v276 = vunpack.c.l.b16 %v177
    %v277 = vunpack.c.h.b16 %v177
    %v278 = vunpack.c.l.b16 %v178
    %v279 = vunpack.c.h.b16 %v178
    %v280 = vunpack.c.l.b16 %v179
    %v281 = vunpack.c.h.b16 %v179
    %v282 = vunpack.c.l.b16 %v180
    %v283 = vunpack.c.h.b16 %v180
    %v284 = vunpack.c.l.b16 %v181
    %v285 = vunpack.c.h.b16 %v181
    %v286 = vunpack.c.l.b16 %v182
    %v287 = vunpack.c.h.b16 %v182
    %v288 = vunpack.c.l.b16 %v183
    %v289 = vunpack.c.h.b16 %v183
    %v290 = vunpack.c.l.b16 %v184
    %v291 = vunpack.c.h.b16 %v184
    %v292 = vunpack.c.l.b16 %v185
    %v293 = vunpack.c.h.b16 %v185
    %v294 = vunpack.c.l.b16 %v186
    %v295 = vunpack.c.h.b16 %v186
    %v296 = vunpack.c.l.b16 %v187
    %v297 = vunpack.c.h.b16 %v187
    %v298 = vunpack.c.l.b16 %v188
    %v299 = vunpack.c.h.b16 %v188
    %v300 = vunpack.c.l.b16 %v189
    %v301 = vunpack.c.h.b16 %v189
    %v302 = vunpack.c.l.b16 %v190
    %v303 = vunpack.c.h.b16 %v190
    %v304 = vunpack.c.l.b16 %v191
    %v305 = vunpack.c.h.b16 %v191
    %v306 = vunpack.c.l.b16 %v192
    %v307 = vunpack.c.h.b16 %v192
    %v308 = vunpack.c.l.b16 %v193
    %v309 = vunpack.c.h.b16 %v193
    %v310 = vunpack.c.l.b16 %v194
    %v311 = vunpack.c.h.b16 %v194
    %v312 = vunpack.c.l.b16 %v195
    %v313 = vunpack.c.h.b16 %v195
    %v314 = vpack.c.b16 %v254, %v250
    %v315 = vpack.c.b16 %v255, %v251
    %v316 = vpack.c.b16 %v256, %v252
    %v317 = vpack.c.b16 %v257, %v253
    %v318 = vpack.c.b16 %v262, %v258
    %v319 = vpack.c.b16 %v263, %v259
    %v320 = vpack.c.b16 %v264, %v260
    %v321 = vpack.c.b16 %v265, %v261
    %v322 = vpack.c.b16 %v270, %v266
    %v323 = vpack.c.b16 %v271, %v267
    %v324 = vpack.c.b16 %v272, %v268
    %v325 = vpack.c.b16 %v273, %v269
    %v326 = vpack.c.b16 %v278, %v274
    %v327 = vpack.c.b16 %v279, %v275
    %v328 = vpack.c.b16 %v280, %v276
    %v329 = vpack.c.b16 %v281, %v277
    %v330 = vpack.c.b16 %v286, %v282
    %v331 = vpack.c.b16 %v287, %v283
    %v332 = vpack.c.b16 %v288, %v284
    %v333 = vpack.c.b16 %v289, %v285
    %v334 = vpack.c.b16 %v294, %v290
    %v335 = vpack.c.b16 %v295, %v291
    %v336 = vpack.c.b16 %v296, %v292
    %v337 = vpack.c.b16 %v297, %v293
    %v338 = vpack.c.b16 %v302, %v298
    %v339 = vpack.c.b16 %v303, %v299
    %v340 = vpack.c.b16 %v304, %v300
    %v341 = vpack.c.b16 %v305, %v301
    %v342 = vpack.c.b16 %v310, %v306
    %v343 = vpack.c.b16 %v311, %v307
    %v344 = vpack.c.b16 %v312, %v308
    %v345 = vpack.c.b16 %v313, %v309
    %378 = vmatprep.subr.bf16.mxu0 %v315
    %379 = vmatpush1.bf16.msra.mxu0 %v314
    %380 = vmatprep.subr.bf16.mxu0 %v319
    %381 = vmatpush1.bf16.msra.mxu0 %v318
    %382 = vmatprep.subr.bf16.mxu0 %v323
    %383 = vmatpush1.bf16.msra.mxu0 %v322
    %384 = vmatprep.subr.bf16.mxu0 %v327
    %385 = vmatpush1.bf16.msra.mxu0 %v326
    %386 = vmatprep.subr.bf16.mxu0 %v331
    %387 = vmatpush1.bf16.msra.mxu0 %v330
    %388 = vmatprep.subr.bf16.mxu0 %v335
    %389 = vmatpush1.bf16.msra.mxu0 %v334
    %390 = vmatprep.subr.bf16.mxu0 %v339
    %391 = vmatpush1.bf16.msra.mxu0 %v338
    %392 = vmatprep.subr.bf16.mxu0 %v343
    %393 = vmatpush1.bf16.msra.mxu0 %v342
    %394 = vmatprep.subr.bf16.mxu0 0
    %395 = vmatpush1.bf16.msra.mxu0 0
    %396 = vmatprep.subr.bf16.mxu0 0
    %397 = vmatpush1.bf16.msra.mxu0 0
    %398 = vmatprep.subr.bf16.mxu0 0
    %399 = vmatpush1.bf16.msra.mxu0 0
    %400 = vmatprep.subr.bf16.mxu0 0
    %401 = vmatpush1.bf16.msra.mxu0 0
    %402 = vmatprep.subr.bf16.mxu0 0
    %403 = vmatpush1.bf16.msra.mxu0 0
    %404 = vmatprep.subr.bf16.mxu0 0
    %405 = vmatpush1.bf16.msra.mxu0 0
    %406 = vmatprep.subr.bf16.mxu0 0
    %407 = vmatpush1.bf16.msra.mxu0 0
    %408 = vmatprep.subr.bf16.mxu0 0
    %409 = vmatpush1.bf16.msra.mxu0 0
    %410 = vmatprep.mubr.bf16.mxu0 0
    %411 = vmatmul.mubr.bf16.gmra.mrb[0].mxu0 %v163
    %v412 = vpop.f32.mrb[0].mxu0
    %v413 = vadd.f32 %v201, %v412
    %v414 = vpop.f32.mrb[0].mxu0
    %v415 = vadd.f32 %v205, %v414
    %v416 = vpop.f32.mrb[0].mxu0
    %v417 = vadd.f32 %v201, %v416
    %v418 = vpop.f32.mrb[0].mxu0
    %v419 = vadd.f32 %v205, %v418
    %420 = vdwg.mxu0
    %421 = vmatprep.subr.bf16.mxu0 %v317
    %422 = vmatpush1.bf16.msra.mxu0 %v316
    %423 = vmatprep.subr.bf16.mxu0 %v321
    %424 = vmatpush1.bf16.msra.mxu0 %v320
    %425 = vmatprep.subr.bf16.mxu0 %v325
    %426 = vmatpush1.bf16.msra.mxu0 %v324
    %427 = vmatprep.subr.bf16.mxu0 %v329
    %428 = vmatpush1.bf16.msra.mxu0 %v328
    %429 = vmatprep.subr.bf16.mxu0 %v333
    %430 = vmatpush1.bf16.msra.mxu0 %v332
    %431 = vmatprep.subr.bf16.mxu0 %v337
    %432 = vmatpush1.bf16.msra.mxu0 %v336
    %433 = vmatprep.subr.bf16.mxu0 %v341
    %434 = vmatpush1.bf16.msra.mxu0 %v340
    %435 = vmatprep.subr.bf16.mxu0 %v345
    %436 = vmatpush1.bf16.msra.mxu0 %v344
    %437 = vmatprep.subr.bf16.mxu0 0
    %438 = vmatpush1.bf16.msra.mxu0 0
    %439 = vmatprep.subr.bf16.mxu0 0
    %440 = vmatpush1.bf16.msra.mxu0 0
    %441 = vmatprep.subr.bf16.mxu0 0
    %442 = vmatpush1.bf16.msra.mxu0 0
    %443 = vmatprep.subr.bf16.mxu0 0
    %444 = vmatpush1.bf16.msra.mxu0 0
    %445 = vmatprep.subr.bf16.mxu0 0
    %446 = vmatpush1.bf16.msra.mxu0 0
    %447 = vmatprep.subr.bf16.mxu0 0
    %448 = vmatpush1.bf16.msra.mxu0 0
    %449 = vmatprep.subr.bf16.mxu0 0
    %450 = vmatpush1.bf16.msra.mxu0 0
    %451 = vmatprep.subr.bf16.mxu0 0
    %452 = vmatpush1.bf16.msra.mxu0 0
    %453 = vmatprep.mubr.bf16.mxu0 0
    %454 = vmatmul.mubr.bf16.gmra.mrb[0].mxu0 %v163
    %v455 = vpop.f32.mrb[0].mxu0
    %v456 = vadd.f32 %v209, %v455
    %v457 = vpop.f32.mrb[0].mxu0
    %v458 = vadd.f32 %v213, %v457
    %v459 = vpop.f32.mrb[0].mxu0
    %v460 = vadd.f32 %v209, %v459
    %v461 = vpop.f32.mrb[0].mxu0
    %v462 = vadd.f32 %v213, %v461
    %463 = vdwg.mxu0
    %v464 = vmax.f32 %v413, 0.0
    %v465 = vmax.f32 %v415, 0.0
    %v466 = vmax.f32 %v456, 0.0
    %v467 = vmax.f32 %v458, 0.0
    %v468 = vmax.f32 %v417, 0.0
    %v469 = vmax.f32 %v419, 0.0
    %v470 = vmax.f32 %v460, 0.0
    %v471 = vmax.f32 %v462, 0.0
    %v472 = vld [vmem:[#allocation8] sm:$0xff]
    %v473 = vld [vmem:[#allocation8 + $0x8] sm:$0xff]
    %v474 = vld [vmem:[#allocation8 + $0x10] sm:$0xff]
    %v475 = vld [vmem:[#allocation8 + $0x18] sm:$0xff]
    %v476 = vld [vmem:[#allocation8 + $0x20] sm:$0xff]
    %v477 = vld [vmem:[#allocation8 + $0x28] sm:$0xff]
    %v478 = vld [vmem:[#allocation8 + $0x30] sm:$0xff]
    %v479 = vld [vmem:[#allocation8 + $0x38] sm:$0xff]
    %v480 = vld [vmem:[#allocation8 + $0x40] sm:$0xff]
    %v481 = vld [vmem:[#allocation8 + $0x48] sm:$0xff]
    %v482 = vld [vmem:[#allocation8 + $0x50] sm:$0xff]
    %v483 = vld [vmem:[#allocation8 + $0x58] sm:$0xff]
    %v484 = vld [vmem:[#allocation8 + $0x60] sm:$0xff]
    %v485 = vld [vmem:[#allocation8 + $0x68] sm:$0xff]
    %v486 = vld [vmem:[#allocation8 + $0x70] sm:$0xff]
    %v487 = vld [vmem:[#allocation8 + $0x78] sm:$0xff]
    %v488 = vld [vmem:[#allocation8 + $0x80] sm:$0xff]
    %v489 = vld [vmem:[#allocation8 + $0x88] sm:$0xff]
    %v490 = vld [vmem:[#allocation8 + $0x90] sm:$0xff]
    %v491 = vld [vmem:[#allocation8 + $0x98] sm:$0xff]
    %v492 = vld [vmem:[#allocation8 + $0xa0] sm:$0xff]
    %v493 = vld [vmem:[#allocation8 + $0xa8] sm:$0xff]
    %v494 = vld [vmem:[#allocation8 + $0xb0] sm:$0xff]
    %v495 = vld [vmem:[#allocation8 + $0xb8] sm:$0xff]
    %v496 = vld [vmem:[#allocation8 + $0xc0] sm:$0xff]
    %v497 = vld [vmem:[#allocation8 + $0xc8] sm:$0xff]
    %v498 = vld [vmem:[#allocation8 + $0xd0] sm:$0xff]
    %v499 = vld [vmem:[#allocation8 + $0xd8] sm:$0xff]
    %v500 = vld [vmem:[#allocation8 + $0xe0] sm:$0xff]
    %v501 = vld [vmem:[#allocation8 + $0xe8] sm:$0xff]
    %v502 = vld [vmem:[#allocation8 + $0xf0] sm:$0xff]
    %v503 = vld [vmem:[#allocation8 + $0xf8] sm:$0xff]
    %v504 = vld [vmem:[#allocation8 + $0x100] sm:$0xff]
    %v505 = vld [vmem:[#allocation8 + $0x108] sm:$0xff]
    %v506 = vld [vmem:[#allocation8 + $0x110] sm:$0xff]
    %v507 = vld [vmem:[#allocation8 + $0x118] sm:$0xff]
    %v508 = vld [vmem:[#allocation8 + $0x120] sm:$0xff]
    %v509 = vld [vmem:[#allocation8 + $0x128] sm:$0xff]
    %v510 = vld [vmem:[#allocation8 + $0x130] sm:$0xff]
    %v511 = vld [vmem:[#allocation8 + $0x138] sm:$0xff]
    %v512 = vld [vmem:[#allocation8 + $0x140] sm:$0xff]
    %v513 = vld [vmem:[#allocation8 + $0x148] sm:$0xff]
    %v514 = vld [vmem:[#allocation8 + $0x150] sm:$0xff]
    %v515 = vld [vmem:[#allocation8 + $0x158] sm:$0xff]
    %v516 = vld [vmem:[#allocation8 + $0x160] sm:$0xff]
    %v517 = vld [vmem:[#allocation8 + $0x168] sm:$0xff]
    %v518 = vld [vmem:[#allocation8 + $0x170] sm:$0xff]
    %v519 = vld [vmem:[#allocation8 + $0x178] sm:$0xff]
    %v520 = vld [vmem:[#allocation8 + $0x180] sm:$0xff]
    %v521 = vld [vmem:[#allocation8 + $0x188] sm:$0xff]
    %v522 = vld [vmem:[#allocation8 + $0x190] sm:$0xff]
    %v523 = vld [vmem:[#allocation8 + $0x198] sm:$0xff]
    %v524 = vld [vmem:[#allocation8 + $0x1a0] sm:$0xff]
    %v525 = vld [vmem:[#allocation8 + $0x1a8] sm:$0xff]
    %v526 = vld [vmem:[#allocation8 + $0x1b0] sm:$0xff]
    %v527 = vld [vmem:[#allocation8 + $0x1b8] sm:$0xff]
    %v528 = vld [vmem:[#allocation8 + $0x1c0] sm:$0xff]
    %v529 = vld [vmem:[#allocation8 + $0x1c8] sm:$0xff]
    %v530 = vld [vmem:[#allocation8 + $0x1d0] sm:$0xff]
    %v531 = vld [vmem:[#allocation8 + $0x1d8] sm:$0xff]
    %v532 = vld [vmem:[#allocation8 + $0x1e0] sm:$0xff]
    %v533 = vld [vmem:[#allocation8 + $0x1e8] sm:$0xff]
    %v534 = vld [vmem:[#allocation8 + $0x1f0] sm:$0xff]
    %v535 = vld [vmem:[#allocation8 + $0x1f8] sm:$0xff]
    %v536 = vpack.c.bf16 %v468, %v464
    %v537 = vpack.c.bf16 %v469, %v465
    %v538 = vpack.c.bf16 %v470, %v466
    %v539 = vpack.c.bf16 %v471, %v467
    %v604 = vunpack.c.l.b16 %v472
    %v605 = vunpack.c.h.b16 %v472
    %v606 = vunpack.c.l.b16 %v473
    %v607 = vunpack.c.h.b16 %v473
    %v608 = vunpack.c.l.b16 %v474
    %v609 = vunpack.c.h.b16 %v474
    %v610 = vunpack.c.l.b16 %v475
    %v611 = vunpack.c.h.b16 %v475
    %v612 = vunpack.c.l.b16 %v476
    %v613 = vunpack.c.h.b16 %v476
    %v614 = vunpack.c.l.b16 %v477
    %v615 = vunpack.c.h.b16 %v477
    %v616 = vunpack.c.l.b16 %v478
    %v617 = vunpack.c.h.b16 %v478
    %v618 = vunpack.c.l.b16 %v479
    %v619 = vunpack.c.h.b16 %v479
    %v620 = vunpack.c.l.b16 %v480
    %v621 = vunpack.c.h.b16 %v480
    %v622 = vunpack.c.l.b16 %v481
    %v623 = vunpack.c.h.b16 %v481
    %v624 = vunpack.c.l.b16 %v482
    %v625 = vunpack.c.h.b16 %v482
    %v626 = vunpack.c.l.b16 %v483
    %v627 = vunpack.c.h.b16 %v483
    %v628 = vunpack.c.l.b16 %v484
    %v629 = vunpack.c.h.b16 %v484
    %v630 = vunpack.c.l.b16 %v485
    %v631 = vunpack.c.h.b16 %v485
    %v632 = vunpack.c.l.b16 %v486
    %v633 = vunpack.c.h.b16 %v486
    %v634 = vunpack.c.l.b16 %v487
    %v635 = vunpack.c.h.b16 %v487
    %v636 = vunpack.c.l.b16 %v488
    %v637 = vunpack.c.h.b16 %v488
    %v638 = vunpack.c.l.b16 %v489
    %v639 = vunpack.c.h.b16 %v489
    %v640 = vunpack.c.l.b16 %v490
    %v641 = vunpack.c.h.b16 %v490
    %v642 = vunpack.c.l.b16 %v491
    %v643 = vunpack.c.h.b16 %v491
    %v644 = vunpack.c.l.b16 %v492
    %v645 = vunpack.c.h.b16 %v492
    %v646 = vunpack.c.l.b16 %v493
    %v647 = vunpack.c.h.b16 %v493
    %v648 = vunpack.c.l.b16 %v494
    %v649 = vunpack.c.h.b16 %v494
    %v650 = vunpack.c.l.b16 %v495
    %v651 = vunpack.c.h.b16 %v495
    %v652 = vunpack.c.l.b16 %v496
    %v653 = vunpack.c.h.b16 %v496
    %v654 = vunpack.c.l.b16 %v497
    %v655 = vunpack.c.h.b16 %v497
    %v656 = vunpack.c.l.b16 %v498
    %v657 = vunpack.c.h.b16 %v498
    %v658 = vunpack.c.l.b16 %v499
    %v659 = vunpack.c.h.b16 %v499
    %v660 = vunpack.c.l.b16 %v500
    %v661 = vunpack.c.h.b16 %v500
    %v662 = vunpack.c.l.b16 %v501
    %v663 = vunpack.c.h.b16 %v501
    %v664 = vunpack.c.l.b16 %v502
    %v665 = vunpack.c.h.b16 %v502
    %v666 = vunpack.c.l.b16 %v503
    %v667 = vunpack.c.h.b16 %v503
    %v668 = vunpack.c.l.b16 %v504
    %v669 = vunpack.c.h.b16 %v504
    %v670 = vunpack.c.l.b16 %v505
    %v671 = vunpack.c.h.b16 %v505
    %v672 = vunpack.c.l.b16 %v506
    %v673 = vunpack.c.h.b16 %v506
    %v674 = vunpack.c.l.b16 %v507
    %v675 = vunpack.c.h.b16 %v507
    %v676 = vunpack.c.l.b16 %v508
    %v677 = vunpack.c.h.b16 %v508
    %v678 = vunpack.c.l.b16 %v509
    %v679 = vunpack.c.h.b16 %v509
    %v680 = vunpack.c.l.b16 %v510
    %v681 = vunpack.c.h.b16 %v510
    %v682 = vunpack.c.l.b16 %v511
    %v683 = vunpack.c.h.b16 %v511
    %v684 = vunpack.c.l.b16 %v512
    %v685 = vunpack.c.h.b16 %v512
    %v686 = vunpack.c.l.b16 %v513
    %v687 = vunpack.c.h.b16 %v513
    %v688 = vunpack.c.l.b16 %v514
    %v689 = vunpack.c.h.b16 %v514
    %v690 = vunpack.c.l.b16 %v515
    %v691 = vunpack.c.h.b16 %v515
    %v692 = vunpack.c.l.b16 %v516
    %v693 = vunpack.c.h.b16 %v516
    %v694 = vunpack.c.l.b16 %v517
    %v695 = vunpack.c.h.b16 %v517
    %v696 = vunpack.c.l.b16 %v518
    %v697 = vunpack.c.h.b16 %v518
    %v698 = vunpack.c.l.b16 %v519
    %v699 = vunpack.c.h.b16 %v519
    %v700 = vunpack.c.l.b16 %v520
    %v701 = vunpack.c.h.b16 %v520
    %v702 = vunpack.c.l.b16 %v521
    %v703 = vunpack.c.h.b16 %v521
    %v704 = vunpack.c.l.b16 %v522
    %v705 = vunpack.c.h.b16 %v522
    %v706 = vunpack.c.l.b16 %v523
    %v707 = vunpack.c.h.b16 %v523
    %v708 = vunpack.c.l.b16 %v524
    %v709 = vunpack.c.h.b16 %v524
    %v710 = vunpack.c.l.b16 %v525
    %v711 = vunpack.c.h.b16 %v525
    %v712 = vunpack.c.l.b16 %v526
    %v713 = vunpack.c.h.b16 %v526
    %v714 = vunpack.c.l.b16 %v527
    %v715 = vunpack.c.h.b16 %v527
    %v716 = vunpack.c.l.b16 %v528
    %v717 = vunpack.c.h.b16 %v528
    %v718 = vunpack.c.l.b16 %v529
    %v719 = vunpack.c.h.b16 %v529
    %v720 = vunpack.c.l.b16 %v530
    %v721 = vunpack.c.h.b16 %v530
    %v722 = vunpack.c.l.b16 %v531
    %v723 = vunpack.c.h.b16 %v531
    %v724 = vunpack.c.l.b16 %v532
    %v725 = vunpack.c.h.b16 %v532
    %v726 = vunpack.c.l.b16 %v533
    %v727 = vunpack.c.h.b16 %v533
    %v728 = vunpack.c.l.b16 %v534
    %v729 = vunpack.c.h.b16 %v534
    %v730 = vunpack.c.l.b16 %v535
    %v731 = vunpack.c.h.b16 %v535
    %v732 = vpack.c.b16 %v606, %v604
    %v733 = vpack.c.b16 %v607, %v605
    %v734 = vpack.c.b16 %v610, %v608
    %v735 = vpack.c.b16 %v611, %v609
    %v736 = vpack.c.b16 %v614, %v612
    %v737 = vpack.c.b16 %v615, %v613
    %v738 = vpack.c.b16 %v618, %v616
    %v739 = vpack.c.b16 %v619, %v617
    %v740 = vpack.c.b16 %v622, %v620
    %v741 = vpack.c.b16 %v623, %v621
    %v742 = vpack.c.b16 %v626, %v624
    %v743 = vpack.c.b16 %v627, %v625
    %v744 = vpack.c.b16 %v630, %v628
    %v745 = vpack.c.b16 %v631, %v629
    %v746 = vpack.c.b16 %v634, %v632
    %v747 = vpack.c.b16 %v635, %v633
    %v748 = vpack.c.b16 %v638, %v636
    %v749 = vpack.c.b16 %v639, %v637
    %v750 = vpack.c.b16 %v642, %v640
    %v751 = vpack.c.b16 %v643, %v641
    %v752 = vpack.c.b16 %v646, %v644
    %v753 = vpack.c.b16 %v647, %v645
    %v754 = vpack.c.b16 %v650, %v648
    %v755 = vpack.c.b16 %v651, %v649
    %v756 = vpack.c.b16 %v654, %v652
    %v757 = vpack.c.b16 %v655, %v653
    %v758 = vpack.c.b16 %v658, %v656
    %v759 = vpack.c.b16 %v659, %v657
    %v760 = vpack.c.b16 %v662, %v660
    %v761 = vpack.c.b16 %v663, %v661
    %v762 = vpack.c.b16 %v666, %v664
    %v763 = vpack.c.b16 %v667, %v665
    %v764 = vpack.c.b16 %v670, %v668
    %v765 = vpack.c.b16 %v671, %v669
    %v766 = vpack.c.b16 %v674, %v672
    %v767 = vpack.c.b16 %v675, %v673
    %v768 = vpack.c.b16 %v678, %v676
    %v769 = vpack.c.b16 %v679, %v677
    %v770 = vpack.c.b16 %v682, %v680
    %v771 = vpack.c.b16 %v683, %v681
    %v772 = vpack.c.b16 %v686, %v684
    %v773 = vpack.c.b16 %v687, %v685
    %v774 = vpack.c.b16 %v690, %v688
    %v775 = vpack.c.b16 %v691, %v689
    %v776 = vpack.c.b16 %v694, %v692
    %v777 = vpack.c.b16 %v695, %v693
    %v778 = vpack.c.b16 %v698, %v696
    %v779 = vpack.c.b16 %v699, %v697
    %v780 = vpack.c.b16 %v702, %v700
    %v781 = vpack.c.b16 %v703, %v701
    %v782 = vpack.c.b16 %v706, %v704
    %v783 = vpack.c.b16 %v707, %v705
    %v784 = vpack.c.b16 %v710, %v708
    %v785 = vpack.c.b16 %v711, %v709
    %v786 = vpack.c.b16 %v714, %v712
    %v787 = vpack.c.b16 %v715, %v713
    %v788 = vpack.c.b16 %v718, %v716
    %v789 = vpack.c.b16 %v719, %v717
    %v790 = vpack.c.b16 %v722, %v720
    %v791 = vpack.c.b16 %v723, %v721
    %v792 = vpack.c.b16 %v726, %v724
    %v793 = vpack.c.b16 %v727, %v725
    %v794 = vpack.c.b16 %v730, %v728
    %v795 = vpack.c.b16 %v731, %v729
    %860 = vmatprep.subr.bf16.mxu0 %v733
    %861 = vmatpush1.bf16.msra.mxu0 %v732
    %862 = vmatprep.subr.bf16.mxu0 %v735
    %863 = vmatpush1.bf16.msra.mxu0 %v734
    %864 = vmatprep.subr.bf16.mxu0 %v737
    %865 = vmatpush1.bf16.msra.mxu0 %v736
    %866 = vmatprep.subr.bf16.mxu0 %v739
    %867 = vmatpush1.bf16.msra.mxu0 %v738
    %868 = vmatprep.subr.bf16.mxu0 %v741
    %869 = vmatpush1.bf16.msra.mxu0 %v740
    %870 = vmatprep.subr.bf16.mxu0 %v743
    %871 = vmatpush1.bf16.msra.mxu0 %v742
    %872 = vmatprep.subr.bf16.mxu0 %v745
    %873 = vmatpush1.bf16.msra.mxu0 %v744
    %874 = vmatprep.subr.bf16.mxu0 %v747
    %875 = vmatpush1.bf16.msra.mxu0 %v746
    %876 = vmatprep.subr.bf16.mxu0 %v749
    %877 = vmatpush1.bf16.msra.mxu0 %v748
    %878 = vmatprep.subr.bf16.mxu0 %v751
    %879 = vmatpush1.bf16.msra.mxu0 %v750
    %880 = vmatprep.subr.bf16.mxu0 %v753
    %881 = vmatpush1.bf16.msra.mxu0 %v752
    %882 = vmatprep.subr.bf16.mxu0 %v755
    %883 = vmatpush1.bf16.msra.mxu0 %v754
    %884 = vmatprep.subr.bf16.mxu0 %v757
    %885 = vmatpush1.bf16.msra.mxu0 %v756
    %886 = vmatprep.subr.bf16.mxu0 %v759
    %887 = vmatpush1.bf16.msra.mxu0 %v758
    %888 = vmatprep.subr.bf16.mxu0 %v761
    %889 = vmatpush1.bf16.msra.mxu0 %v760
    %890 = vmatprep.subr.bf16.mxu0 %v763
    %891 = vmatpush1.bf16.msra.mxu0 %v762
    %892 = vmatprep.mubr.bf16.mxu0 %v537
    %893 = vmatmul.mubr.bf16.gmra.mrb[0].mxu0 %v536
    %v894 = vpop.f32.mrb[0].mxu0
    %v895 = vadd.f32 0.0, %v894
    %v896 = vpop.f32.mrb[0].mxu0
    %v897 = vadd.f32 0.0, %v896
    %v898 = vpop.f32.mrb[0].mxu0
    %v899 = vadd.f32 0.0, %v898
    %v900 = vpop.f32.mrb[0].mxu0
    %v901 = vadd.f32 0.0, %v900
    %902 = vdwg.mxu0
    %903 = vmatprep.subr.bf16.mxu0 %v765
    %904 = vmatpush1.bf16.msra.mxu0 %v764
    %905 = vmatprep.subr.bf16.mxu0 %v767
    %906 = vmatpush1.bf16.msra.mxu0 %v766
    %907 = vmatprep.subr.bf16.mxu0 %v769
    %908 = vmatpush1.bf16.msra.mxu0 %v768
    %909 = vmatprep.subr.bf16.mxu0 %v771
    %910 = vmatpush1.bf16.msra.mxu0 %v770
    %911 = vmatprep.subr.bf16.mxu0 %v773
    %912 = vmatpush1.bf16.msra.mxu0 %v772
    %913 = vmatprep.subr.bf16.mxu0 %v775
    %914 = vmatpush1.bf16.msra.mxu0 %v774
    %915 = vmatprep.subr.bf16.mxu0 %v777
    %916 = vmatpush1.bf16.msra.mxu0 %v776
    %917 = vmatprep.subr.bf16.mxu0 %v779
    %918 = vmatpush1.bf16.msra.mxu0 %v778
    %919 = vmatprep.subr.bf16.mxu0 %v781
    %920 = vmatpush1.bf16.msra.mxu0 %v780
    %921 = vmatprep.subr.bf16.mxu0 %v783
    %922 = vmatpush1.bf16.msra.mxu0 %v782
    %923 = vmatprep.subr.bf16.mxu0 %v785
    %924 = vmatpush1.bf16.msra.mxu0 %v784
    %925 = vmatprep.subr.bf16.mxu0 %v787
    %926 = vmatpush1.bf16.msra.mxu0 %v786
    %927 = vmatprep.subr.bf16.mxu0 %v789
    %928 = vmatpush1.bf16.msra.mxu0 %v788
    %929 = vmatprep.subr.bf16.mxu0 %v791
    %930 = vmatpush1.bf16.msra.mxu0 %v790
    %931 = vmatprep.subr.bf16.mxu0 %v793
    %932 = vmatpush1.bf16.msra.mxu0 %v792
    %933 = vmatprep.subr.bf16.mxu0 %v795
    %934 = vmatpush1.bf16.msra.mxu0 %v794
    %935 = vmatprep.mubr.bf16.mxu0 %v539
    %936 = vmatmul.mubr.bf16.gmra.mrb[0].mxu0 %v538
    %v937 = vpop.f32.mrb[0].mxu0
    %v938 = vadd.f32 %v895, %v937
    %v939 = vpop.f32.mrb[0].mxu0
    %v940 = vadd.f32 %v897, %v939
    %v941 = vpop.f32.mrb[0].mxu0
    %v942 = vadd.f32 %v899, %v941
    %v943 = vpop.f32.mrb[0].mxu0
    %v944 = vadd.f32 %v901, %v943
    %945 = vdwg.mxu0
    %v946 = vld [vmem:[%s4 + $0x4] sm:$0x3]
    %v948 = vlaneseq
    %v949 = vshrl.u32 %v948, 7
    %v950 = vsub.s32 0, %v949
    %v951 = vrot.slane %v946, %v950
    %v952 = vlaneseq
    %v953 = vshrl.u32 %v952, 7
    %v954 = vsub.s32 1, %v953
    %v955 = vrot.slane %v946, %v954
    %958 = vmatprep.subr.mxu0 %v940
    %959 = vmatpush1.msra.mxu0 %v938
    %960 = vmatprep.subr.mxu0 %v944
    %961 = vmatpush1.msra.mxu0 %v942
    %962 = vmatprep.subr.mxu0 0.0
    %963 = vmatpush1.msra.mxu0 0.0
    %964 = vmatprep.subr.mxu0 0.0
    %965 = vmatpush1.msra.mxu0 0.0
    %966 = vmatprep.subr.mxu0 0.0
    %967 = vmatpush1.msra.mxu0 0.0
    %968 = vmatprep.subr.mxu0 0.0
    %969 = vmatpush1.msra.mxu0 0.0
    %970 = vmatprep.subr.mxu0 0.0
    %971 = vmatpush1.msra.mxu0 0.0
    %972 = vmatprep.subr.mxu0 0.0
    %973 = vmatpush1.msra.mxu0 0.0
    %974 = vmatprep.subr.mxu0 0.0
    %975 = vmatpush1.msra.mxu0 0.0
    %976 = vmatprep.subr.mxu0 0.0
    %977 = vmatpush1.msra.mxu0 0.0
    %978 = vmatprep.subr.mxu0 0.0
    %979 = vmatpush1.msra.mxu0 0.0
    %980 = vmatprep.subr.mxu0 0.0
    %981 = vmatpush1.msra.mxu0 0.0
    %982 = vmatprep.subr.mxu0 0.0
    %983 = vmatpush1.msra.mxu0 0.0
    %984 = vmatprep.subr.mxu0 0.0
    %985 = vmatpush1.msra.mxu0 0.0
    %986 = vmatprep.subr.mxu0 0.0
    %987 = vmatpush1.msra.mxu0 0.0
    %988 = vmatprep.subr.mxu0 0.0
    %989 = vmatpush1.msra.mxu0 0.0
    %990 = vmatprep.subr.mxu0 0.0
    %991 = vmatpush1.msra.mxu0 0.0
    %992 = vmatprep.subr.mxu0 0.0
    %993 = vmatpush1.msra.mxu0 0.0
    %994 = vmatprep.subr.mxu0 0.0
    %995 = vmatpush1.msra.mxu0 0.0
    %996 = vmatprep.subr.mxu0 0.0
    %997 = vmatpush1.msra.mxu0 0.0
    %998 = vmatprep.subr.mxu0 0.0
    %999 = vmatpush1.msra.mxu0 0.0
    %1000 = vmatprep.subr.mxu0 0.0
    %1001 = vmatpush1.msra.mxu0 0.0
    %1002 = vmatprep.subr.mxu0 0.0
    %1003 = vmatpush1.msra.mxu0 0.0
    %1004 = vmatprep.subr.mxu0 0.0
    %1005 = vmatpush1.msra.mxu0 0.0
    %1006 = vmatprep.subr.mxu0 0.0
    %1007 = vmatpush1.msra.mxu0 0.0
    %1008 = vmatprep.subr.mxu0 0.0
    %1009 = vmatpush1.msra.mxu0 0.0
    %1010 = vmatprep.subr.mxu0 0.0
    %1011 = vmatpush1.msra.mxu0 0.0
    %1012 = vmatprep.subr.mxu0 0.0
    %1013 = vmatpush1.msra.mxu0 0.0
    %1014 = vmatprep.subr.mxu0 0.0
    %1015 = vmatpush1.msra.mxu0 0.0
    %1016 = vmatprep.subr.mxu0 0.0
    %1017 = vmatpush1.msra.mxu0 0.0
    %1018 = vmatprep.subr.mxu0 0.0
    %1019 = vmatpush1.msra.mxu0 0.0
    %1020 = vmatprep.subr.mxu0 0.0
    %1021 = vmatpush1.msra.mxu0 0.0
    %1022 = vmatprep.mubr.f32.mxu0 0.0
    %1023 = vmatmul.mubr.f32.gmra.mrb[0].mxu0 %v83
    %v1024 = vpop.f32.mrb[0].mxu0
    %v1025 = vadd.f32 %v951, %v1024
    %v1026 = vpop.f32.mrb[0].mxu0
    %v1027 = vadd.f32 %v955, %v1026
    %1028 = vmatprep.mubr.f32.mxu0 0.0
    %1029 = vmatmul.mubr.f32.gmra.mrb[0].mxu0 %v86
    %v1030 = vpop.f32.mrb[0].mxu0
    %v1031 = vadd.f32 %v951, %v1030
    %v1032 = vpop.f32.mrb[0].mxu0
    %v1033 = vadd.f32 %v955, %v1032
    %1034 = vdwg.mxu0
    %v1035 = vmax.f32 %v1025, 0.0
    %v1036 = vmax.f32 %v1027, 0.0
    %v1037 = vmax.f32 %v1031, 0.0
    %v1038 = vmax.f32 %v1033, 0.0
    %v1039 = vld [vmem:[#allocation8 + $0x200] sm:$0xf]
    %v1040 = vld [vmem:[#allocation8 + $0x208] sm:$0xf]
    %v1041 = vld [vmem:[#allocation8 + $0x210] sm:$0xf]
    %v1042 = vld [vmem:[#allocation8 + $0x218] sm:$0xf]
    %v1043 = vld [vmem:[#allocation8 + $0x220] sm:$0xf]
    %v1044 = vld [vmem:[#allocation8 + $0x228] sm:$0xf]
    %v1045 = vld [vmem:[#allocation8 + $0x230] sm:$0xf]
    %v1046 = vld [vmem:[#allocation8 + $0x238] sm:$0xf]
    %v1047 = vld [vmem:[#allocation8 + $0x240] sm:$0xf]
    %v1048 = vld [vmem:[#allocation8 + $0x248] sm:$0xf]
    %v1049 = vld [vmem:[#allocation8 + $0x250] sm:$0xf]
    %v1050 = vld [vmem:[#allocation8 + $0x258] sm:$0xf]
    %v1051 = vld [vmem:[#allocation8 + $0x260] sm:$0xf]
    %v1052 = vld [vmem:[#allocation8 + $0x268] sm:$0xf]
    %v1053 = vld [vmem:[#allocation8 + $0x270] sm:$0xf]
    %v1054 = vld [vmem:[#allocation8 + $0x278] sm:$0xf]
    %v1055 = vld [vmem:[#allocation8 + $0x280] sm:$0xf]
    %v1056 = vld [vmem:[#allocation8 + $0x288] sm:$0xf]
    %v1057 = vld [vmem:[#allocation8 + $0x290] sm:$0xf]
    %v1058 = vld [vmem:[#allocation8 + $0x298] sm:$0xf]
    %v1059 = vld [vmem:[#allocation8 + $0x2a0] sm:$0xf]
    %v1060 = vld [vmem:[#allocation8 + $0x2a8] sm:$0xf]
    %v1061 = vld [vmem:[#allocation8 + $0x2b0] sm:$0xf]
    %v1062 = vld [vmem:[#allocation8 + $0x2b8] sm:$0xf]
    %v1063 = vld [vmem:[#allocation8 + $0x2c0] sm:$0xf]
    %v1064 = vld [vmem:[#allocation8 + $0x2c8] sm:$0xf]
    %v1065 = vld [vmem:[#allocation8 + $0x2d0] sm:$0xf]
    %v1066 = vld [vmem:[#allocation8 + $0x2d8] sm:$0xf]
    %v1067 = vld [vmem:[#allocation8 + $0x2e0] sm:$0xf]
    %v1068 = vld [vmem:[#allocation8 + $0x2e8] sm:$0xf]
    %v1069 = vld [vmem:[#allocation8 + $0x2f0] sm:$0xf]
    %v1070 = vld [vmem:[#allocation8 + $0x2f8] sm:$0xf]
    %v1071 = vpack.c.bf16 %v1037, %v1035
    %v1072 = vpack.c.bf16 %v1038, %v1036
    %v1105 = vunpack.c.l.b16 %v1039
    %v1106 = vunpack.c.l.b16 %v1040
    %v1107 = vunpack.c.l.b16 %v1041
    %v1108 = vunpack.c.l.b16 %v1042
    %v1109 = vunpack.c.l.b16 %v1043
    %v1110 = vunpack.c.l.b16 %v1044
    %v1111 = vunpack.c.l.b16 %v1045
    %v1112 = vunpack.c.l.b16 %v1046
    %v1113 = vunpack.c.l.b16 %v1047
    %v1114 = vunpack.c.l.b16 %v1048
    %v1115 = vunpack.c.l.b16 %v1049
    %v1116 = vunpack.c.l.b16 %v1050
    %v1117 = vunpack.c.l.b16 %v1051
    %v1118 = vunpack.c.l.b16 %v1052
    %v1119 = vunpack.c.l.b16 %v1053
    %v1120 = vunpack.c.l.b16 %v1054
    %v1121 = vunpack.c.l.b16 %v1055
    %v1122 = vunpack.c.l.b16 %v1056
    %v1123 = vunpack.c.l.b16 %v1057
    %v1124 = vunpack.c.l.b16 %v1058
    %v1125 = vunpack.c.l.b16 %v1059
    %v1126 = vunpack.c.l.b16 %v1060
    %v1127 = vunpack.c.l.b16 %v1061
    %v1128 = vunpack.c.l.b16 %v1062
    %v1129 = vunpack.c.l.b16 %v1063
    %v1130 = vunpack.c.l.b16 %v1064
    %v1131 = vunpack.c.l.b16 %v1065
    %v1132 = vunpack.c.l.b16 %v1066
    %v1133 = vunpack.c.l.b16 %v1067
    %v1134 = vunpack.c.l.b16 %v1068
    %v1135 = vunpack.c.l.b16 %v1069
    %v1136 = vunpack.c.l.b16 %v1070
    %v1137 = vpack.c.b16 %v1106, %v1105
    %v1138 = vpack.c.b16 %v1108, %v1107
    %v1139 = vpack.c.b16 %v1110, %v1109
    %v1140 = vpack.c.b16 %v1112, %v1111
    %v1141 = vpack.c.b16 %v1114, %v1113
    %v1142 = vpack.c.b16 %v1116, %v1115
    %v1143 = vpack.c.b16 %v1118, %v1117
    %v1144 = vpack.c.b16 %v1120, %v1119
    %v1145 = vpack.c.b16 %v1122, %v1121
    %v1146 = vpack.c.b16 %v1124, %v1123
    %v1147 = vpack.c.b16 %v1126, %v1125
    %v1148 = vpack.c.b16 %v1128, %v1127
    %v1149 = vpack.c.b16 %v1130, %v1129
    %v1150 = vpack.c.b16 %v1132, %v1131
    %v1151 = vpack.c.b16 %v1134, %v1133
    %v1152 = vpack.c.b16 %v1136, %v1135
    %1169 = vmatprep.subr.bf16.mxu0 0
    %1170 = vmatpush1.bf16.msra.mxu0 %v1137
    %1171 = vmatprep.subr.bf16.mxu0 0
    %1172 = vmatpush1.bf16.msra.mxu0 %v1138
    %1173 = vmatprep.subr.bf16.mxu0 0
    %1174 = vmatpush1.bf16.msra.mxu0 %v1139
    %1175 = vmatprep.subr.bf16.mxu0 0
    %1176 = vmatpush1.bf16.msra.mxu0 %v1140
    %1177 = vmatprep.subr.bf16.mxu0 0
    %1178 = vmatpush1.bf16.msra.mxu0 %v1141
    %1179 = vmatprep.subr.bf16.mxu0 0
    %1180 = vmatpush1.bf16.msra.mxu0 %v1142
    %1181 = vmatprep.subr.bf16.mxu0 0
    %1182 = vmatpush1.bf16.msra.mxu0 %v1143
    %1183 = vmatprep.subr.bf16.mxu0 0
    %1184 = vmatpush1.bf16.msra.mxu0 %v1144
    %1185 = vmatprep.subr.bf16.mxu0 0
    %1186 = vmatpush1.bf16.msra.mxu0 %v1145
    %1187 = vmatprep.subr.bf16.mxu0 0
    %1188 = vmatpush1.bf16.msra.mxu0 %v1146
    %1189 = vmatprep.subr.bf16.mxu0 0
    %1190 = vmatpush1.bf16.msra.mxu0 %v1147
    %1191 = vmatprep.subr.bf16.mxu0 0
    %1192 = vmatpush1.bf16.msra.mxu0 %v1148
    %1193 = vmatprep.subr.bf16.mxu0 0
    %1194 = vmatpush1.bf16.msra.mxu0 %v1149
    %1195 = vmatprep.subr.bf16.mxu0 0
    %1196 = vmatpush1.bf16.msra.mxu0 %v1150
    %1197 = vmatprep.subr.bf16.mxu0 0
    %1198 = vmatpush1.bf16.msra.mxu0 %v1151
    %1199 = vmatprep.subr.bf16.mxu0 0
    %1200 = vmatpush1.bf16.msra.mxu0 %v1152
    %1201 = vmatprep.mubr.bf16.mxu0 %v1072
    %1202 = vmatmul.mubr.bf16.gmra.mrb[0].mxu0 %v1071
    %v1203 = vpop.f32.mrb[0].mxu0
    %v1204 = vadd.f32 0.0, %v1203
    %v1205 = vpop.f32.mrb[0].mxu0
    %v1206 = vpop.f32.mrb[0].mxu0
    %v1207 = vadd.f32 0.0, %v1206
    %v1208 = vpop.f32.mrb[0].mxu0
    %1209 = vdwg.mxu0
    %v1210 = vld [vmem:[%s4 + $0x6] sm:$0x1]
    %v1212 = vlaneseq
    %v1213 = vshrl.u32 %v1212, 7
    %v1214 = vsub.s32 0, %v1213
    %v1215 = vrot.slane %v1210, %v1214
    %1217 = vmatprep.subr.mxu0 0.0
    %1218 = vmatpush1.msra.mxu0 %v1204
    %1219 = vmatprep.subr.mxu0 0.0
    %1220 = vmatpush1.msra.mxu0 %v1207
    %1221 = vmatprep.subr.mxu0 0.0
    %1222 = vmatpush1.msra.mxu0 0.0
    %1223 = vmatprep.subr.mxu0 0.0
    %1224 = vmatpush1.msra.mxu0 0.0
    %1225 = vmatprep.subr.mxu0 0.0
    %1226 = vmatpush1.msra.mxu0 0.0
    %1227 = vmatprep.subr.mxu0 0.0
    %1228 = vmatpush1.msra.mxu0 0.0
    %1229 = vmatprep.subr.mxu0 0.0
    %1230 = vmatpush1.msra.mxu0 0.0
    %1231 = vmatprep.subr.mxu0 0.0
    %1232 = vmatpush1.msra.mxu0 0.0
    %1233 = vmatprep.subr.mxu0 0.0
    %1234 = vmatpush1.msra.mxu0 0.0
    %1235 = vmatprep.subr.mxu0 0.0
    %1236 = vmatpush1.msra.mxu0 0.0
    %1237 = vmatprep.subr.mxu0 0.0
    %1238 = vmatpush1.msra.mxu0 0.0
    %1239 = vmatprep.subr.mxu0 0.0
    %1240 = vmatpush1.msra.mxu0 0.0
    %1241 = vmatprep.subr.mxu0 0.0
    %1242 = vmatpush1.msra.mxu0 0.0
    %1243 = vmatprep.subr.mxu0 0.0
    %1244 = vmatpush1.msra.mxu0 0.0
    %1245 = vmatprep.subr.mxu0 0.0
    %1246 = vmatpush1.msra.mxu0 0.0
    %1247 = vmatprep.subr.mxu0 0.0
    %1248 = vmatpush1.msra.mxu0 0.0
    %1249 = vmatprep.subr.mxu0 0.0
    %1250 = vmatpush1.msra.mxu0 0.0
    %1251 = vmatprep.subr.mxu0 0.0
    %1252 = vmatpush1.msra.mxu0 0.0
    %1253 = vmatprep.subr.mxu0 0.0
    %1254 = vmatpush1.msra.mxu0 0.0
    %1255 = vmatprep.subr.mxu0 0.0
    %1256 = vmatpush1.msra.mxu0 0.0
    %1257 = vmatprep.subr.mxu0 0.0
    %1258 = vmatpush1.msra.mxu0 0.0
    %1259 = vmatprep.subr.mxu0 0.0
    %1260 = vmatpush1.msra.mxu0 0.0
    %1261 = vmatprep.subr.mxu0 0.0
    %1262 = vmatpush1.msra.mxu0 0.0
    %1263 = vmatprep.subr.mxu0 0.0
    %1264 = vmatpush1.msra.mxu0 0.0
    %1265 = vmatprep.subr.mxu0 0.0
    %1266 = vmatpush1.msra.mxu0 0.0
    %1267 = vmatprep.subr.mxu0 0.0
    %1268 = vmatpush1.msra.mxu0 0.0
    %1269 = vmatprep.subr.mxu0 0.0
    %1270 = vmatpush1.msra.mxu0 0.0
    %1271 = vmatprep.subr.mxu0 0.0
    %1272 = vmatpush1.msra.mxu0 0.0
    %1273 = vmatprep.subr.mxu0 0.0
    %1274 = vmatpush1.msra.mxu0 0.0
    %1275 = vmatprep.subr.mxu0 0.0
    %1276 = vmatpush1.msra.mxu0 0.0
    %1277 = vmatprep.subr.mxu0 0.0
    %1278 = vmatpush1.msra.mxu0 0.0
    %1279 = vmatprep.subr.mxu0 0.0
    %1280 = vmatpush1.msra.mxu0 0.0
    %1281 = vmatprep.mubr.f32.mxu0 0.0
    %1282 = vmatmul.mubr.f32.gmra.mrb[0].mxu0 %v83
    %v1283 = vpop.f32.mrb[0].mxu0
    %v1284 = vadd.f32 %v1215, %v1283
    %v1285 = vpop.f32.mrb[0].mxu0
    %1286 = vmatprep.mubr.f32.mxu0 0.0
    %1287 = vmatmul.mubr.f32.gmra.mrb[0].mxu0 %v86
    %v1288 = vpop.f32.mrb[0].mxu0
    %v1289 = vadd.f32 %v1215, %v1288
    %v1290 = vpop.f32.mrb[0].mxu0
    %1291 = vdwg.mxu0
    %v1292 = vmax.f32 %v1284, 0.0
    %v1293 = vmax.f32 %v1289, 0.0
    %v1294 = vld [vmem:[#allocation2 + $0xf] sm:$0x1]
    %v1296 = vsel %vm81, %v1294, 0
    %1298 = vmatprep.subr.mxu0 0.0
    %1299 = vmatpush1.msra.mxu0 %v1292
    %1300 = vmatprep.subr.mxu0 0.0
    %1301 = vmatpush1.msra.mxu0 %v1293
    %1302 = vmatprep.subr.mxu0 0.0
    %1303 = vmatpush1.msra.mxu0 0.0
    %1304 = vmatprep.subr.mxu0 0.0
    %1305 = vmatpush1.msra.mxu0 0.0
    %1306 = vmatprep.subr.mxu0 0.0
    %1307 = vmatpush1.msra.mxu0 0.0
    %1308 = vmatprep.subr.mxu0 0.0
    %1309 = vmatpush1.msra.mxu0 0.0
    %1310 = vmatprep.subr.mxu0 0.0
    %1311 = vmatpush1.msra.mxu0 0.0
    %1312 = vmatprep.subr.mxu0 0.0
    %1313 = vmatpush1.msra.mxu0 0.0
    %1314 = vmatprep.subr.mxu0 0.0
    %1315 = vmatpush1.msra.mxu0 0.0
    %1316 = vmatprep.subr.mxu0 0.0
    %1317 = vmatpush1.msra.mxu0 0.0
    %1318 = vmatprep.subr.mxu0 0.0
    %1319 = vmatpush1.msra.mxu0 0.0
    %1320 = vmatprep.subr.mxu0 0.0
    %1321 = vmatpush1.msra.mxu0 0.0
    %1322 = vmatprep.subr.mxu0 0.0
    %1323 = vmatpush1.msra.mxu0 0.0
    %1324 = vmatprep.subr.mxu0 0.0
    %1325 = vmatpush1.msra.mxu0 0.0
    %1326 = vmatprep.subr.mxu0 0.0
    %1327 = vmatpush1.msra.mxu0 0.0
    %1328 = vmatprep.subr.mxu0 0.0
    %1329 = vmatpush1.msra.mxu0 0.0
    %1330 = vmatprep.subr.mxu0 0.0
    %1331 = vmatpush1.msra.mxu0 0.0
    %1332 = vmatprep.subr.mxu0 0.0
    %1333 = vmatpush1.msra.mxu0 0.0
    %1334 = vmatprep.subr.mxu0 0.0
    %1335 = vmatpush1.msra.mxu0 0.0
    %1336 = vmatprep.subr.mxu0 0.0
    %1337 = vmatpush1.msra.mxu0 0.0
    %1338 = vmatprep.subr.mxu0 0.0
    %1339 = vmatpush1.msra.mxu0 0.0
    %1340 = vmatprep.subr.mxu0 0.0
    %1341 = vmatpush1.msra.mxu0 0.0
    %1342 = vmatprep.subr.mxu0 0.0
    %1343 = vmatpush1.msra.mxu0 0.0
    %1344 = vmatprep.subr.mxu0 0.0
    %1345 = vmatpush1.msra.mxu0 0.0
    %1346 = vmatprep.subr.mxu0 0.0
    %1347 = vmatpush1.msra.mxu0 0.0
    %1348 = vmatprep.subr.mxu0 0.0
    %1349 = vmatpush1.msra.mxu0 0.0
    %1350 = vmatprep.subr.mxu0 0.0
    %1351 = vmatpush1.msra.mxu0 0.0
    %1352 = vmatprep.subr.mxu0 0.0
    %1353 = vmatpush1.msra.mxu0 0.0
    %1354 = vmatprep.subr.mxu0 0.0
    %1355 = vmatpush1.msra.mxu0 0.0
    %1356 = vmatprep.subr.mxu0 0.0
    %1357 = vmatpush1.msra.mxu0 0.0
    %1358 = vmatprep.subr.mxu0 0.0
    %1359 = vmatpush1.msra.mxu0 0.0
    %1360 = vmatprep.subr.mxu0 0.0
    %1361 = vmatpush1.msra.mxu0 0.0
    %1362 = vmatprep.mubr.f32.mxu0 0.0
    %1363 = vmatmul.mubr.f32.gmra.mrb[0].mxu0 %v1296
    %v1364 = vpop.f32.mrb[0].mxu0
    %v1365 = vadd.f32 0.0, %v1364
    %v1366 = vpop.f32.mrb[0].mxu0
    %1367 = vdwg.mxu0
    %v1368 = vld [vmem:[#allocation8 + $0x300] sm:$0xff]
    %v1369 = vld [vmem:[#allocation8 + $0x308] sm:$0xff]
    %v1370 = vld [vmem:[#allocation8 + $0x310] sm:$0xff]
    %v1371 = vld [vmem:[#allocation8 + $0x318] sm:$0xff]
    %v1372 = vld [vmem:[#allocation8 + $0x320] sm:$0xff]
    %v1373 = vld [vmem:[#allocation8 + $0x328] sm:$0xff]
    %v1374 = vld [vmem:[#allocation8 + $0x330] sm:$0xff]
    %v1375 = vld [vmem:[#allocation8 + $0x338] sm:$0xff]
    %v1376 = vld [vmem:[#allocation8 + $0x340] sm:$0xff]
    %v1377 = vld [vmem:[#allocation8 + $0x348] sm:$0xff]
    %v1378 = vld [vmem:[#allocation8 + $0x350] sm:$0xff]
    %v1379 = vld [vmem:[#allocation8 + $0x358] sm:$0xff]
    %v1380 = vld [vmem:[#allocation8 + $0x360] sm:$0xff]
    %v1381 = vld [vmem:[#allocation8 + $0x368] sm:$0xff]
    %v1382 = vld [vmem:[#allocation8 + $0x370] sm:$0xff]
    %v1383 = vld [vmem:[#allocation8 + $0x378] sm:$0xff]
    %v1384 = vpack.c.bf16 %v1365, %v1365
    %v1385 = vld [vmem:[%s4 + $0x7] sm:$0x3]
    %v1402 = vunpack.c.l.b16 %v1368
    %v1403 = vunpack.c.h.b16 %v1368
    %v1404 = vunpack.c.l.b16 %v1369
    %v1405 = vunpack.c.h.b16 %v1369
    %v1406 = vunpack.c.l.b16 %v1370
    %v1407 = vunpack.c.h.b16 %v1370
    %v1408 = vunpack.c.l.b16 %v1371
    %v1409 = vunpack.c.h.b16 %v1371
    %v1410 = vunpack.c.l.b16 %v1372
    %v1411 = vunpack.c.h.b16 %v1372
    %v1412 = vunpack.c.l.b16 %v1373
    %v1413 = vunpack.c.h.b16 %v1373
    %v1414 = vunpack.c.l.b16 %v1374
    %v1415 = vunpack.c.h.b16 %v1374
    %v1416 = vunpack.c.l.b16 %v1375
    %v1417 = vunpack.c.h.b16 %v1375
    %v1418 = vunpack.c.l.b16 %v1376
    %v1419 = vunpack.c.h.b16 %v1376
    %v1420 = vunpack.c.l.b16 %v1377
    %v1421 = vunpack.c.h.b16 %v1377
    %v1422 = vunpack.c.l.b16 %v1378
    %v1423 = vunpack.c.h.b16 %v1378
    %v1424 = vunpack.c.l.b16 %v1379
    %v1425 = vunpack.c.h.b16 %v1379
    %v1426 = vunpack.c.l.b16 %v1380
    %v1427 = vunpack.c.h.b16 %v1380
    %v1428 = vunpack.c.l.b16 %v1381
    %v1429 = vunpack.c.h.b16 %v1381
    %v1430 = vunpack.c.l.b16 %v1382
    %v1431 = vunpack.c.h.b16 %v1382
    %v1432 = vunpack.c.l.b16 %v1383
    %v1433 = vunpack.c.h.b16 %v1383
    %v1434 = vpack.c.b16 %v1404, %v1402
    %v1435 = vpack.c.b16 %v1405, %v1403
    %v1436 = vpack.c.b16 %v1408, %v1406
    %v1437 = vpack.c.b16 %v1409, %v1407
    %v1438 = vpack.c.b16 %v1412, %v1410
    %v1439 = vpack.c.b16 %v1413, %v1411
    %v1440 = vpack.c.b16 %v1416, %v1414
    %v1441 = vpack.c.b16 %v1417, %v1415
    %v1442 = vpack.c.b16 %v1420, %v1418
    %v1443 = vpack.c.b16 %v1421, %v1419
    %v1444 = vpack.c.b16 %v1424, %v1422
    %v1445 = vpack.c.b16 %v1425, %v1423
    %v1446 = vpack.c.b16 %v1428, %v1426
    %v1447 = vpack.c.b16 %v1429, %v1427
    %v1448 = vpack.c.b16 %v1432, %v1430
    %v1449 = vpack.c.b16 %v1433, %v1431
    %v1467 = vlaneseq
    %v1468 = vshrl.u32 %v1467, 7
    %v1469 = vsub.s32 0, %v1468
    %v1470 = vrot.slane %v1385, %v1469
    %v1471 = vlaneseq
    %v1472 = vshrl.u32 %v1471, 7
    %v1473 = vsub.s32 1, %v1472
    %v1474 = vrot.slane %v1385, %v1473
    %1477 = vmatprep.subr.bf16.mxu0 %v1435
    %1478 = vmatpush1.bf16.msra.mxu0 %v1434
    %1479 = vmatprep.subr.bf16.mxu0 %v1437
    %1480 = vmatpush1.bf16.msra.mxu0 %v1436
    %1481 = vmatprep.subr.bf16.mxu0 %v1439
    %1482 = vmatpush1.bf16.msra.mxu0 %v1438
    %1483 = vmatprep.subr.bf16.mxu0 %v1441
    %1484 = vmatpush1.bf16.msra.mxu0 %v1440
    %1485 = vmatprep.subr.bf16.mxu0 %v1443
    %1486 = vmatpush1.bf16.msra.mxu0 %v1442
    %1487 = vmatprep.subr.bf16.mxu0 %v1445
    %1488 = vmatpush1.bf16.msra.mxu0 %v1444
    %1489 = vmatprep.subr.bf16.mxu0 %v1447
    %1490 = vmatpush1.bf16.msra.mxu0 %v1446
    %1491 = vmatprep.subr.bf16.mxu0 %v1449
    %1492 = vmatpush1.bf16.msra.mxu0 %v1448
    %1493 = vmatprep.subr.bf16.mxu0 0
    %1494 = vmatpush1.bf16.msra.mxu0 0
    %1495 = vmatprep.subr.bf16.mxu0 0
    %1496 = vmatpush1.bf16.msra.mxu0 0
    %1497 = vmatprep.subr.bf16.mxu0 0
    %1498 = vmatpush1.bf16.msra.mxu0 0
    %1499 = vmatprep.subr.bf16.mxu0 0
    %1500 = vmatpush1.bf16.msra.mxu0 0
    %1501 = vmatprep.subr.bf16.mxu0 0
    %1502 = vmatpush1.bf16.msra.mxu0 0
    %1503 = vmatprep.subr.bf16.mxu0 0
    %1504 = vmatpush1.bf16.msra.mxu0 0
    %1505 = vmatprep.subr.bf16.mxu0 0
    %1506 = vmatpush1.bf16.msra.mxu0 0
    %1507 = vmatprep.subr.bf16.mxu0 0
    %1508 = vmatpush1.bf16.msra.mxu0 0
    %1509 = vmatprep.mubr.bf16.mxu0 0
    %1510 = vmatmul.mubr.bf16.gmra.mrb[0].mxu0 %v1384
    %v1511 = vpop.f32.mrb[0].mxu0
    %v1512 = vadd.f32 %v1470, %v1511
    %v1513 = vpop.f32.mrb[0].mxu0
    %v1514 = vadd.f32 %v1474, %v1513
    %v1515 = vpop.f32.mrb[0].mxu0
    %v1516 = vpop.f32.mrb[0].mxu0
    %1517 = vdwg.mxu0
    %v1518 = vmax.f32 %v1512, 0.0
    %v1519 = vmax.f32 %v1514, 0.0
    %v1522 = vcombine.low %v1518, %v1519
    %v1524 = vunpack.c.l.s4 1966171168
    %v1525 = vunpack.c.0.s8 %v1524
    %v1526 = vlaneseq
    %v1527 = vshrl.u32 %v1526, 7
    %v1528 = vsub.s32 %v1525, %v1527
    %v1529 = vrot.slane %v1522, %v1528
    %v1531 = vunpack.c.l.s4 1966171168
    %v1532 = vunpack.c.0.s8 %v1531
    %v1533 = vlaneseq
    %v1534 = vshrl.u32 %v1533, 7
    %v1535 = vsub.s32 %v1532, %v1534
    %v1536 = vrot.slane %v1529, %v1535
    %v1538 = vlaneseq
    %vm1539 = vcmp.ge.s32.totalorder %v1538, 0
    %vm1540 = vcmp.lt.s32.totalorder %v1538, 256
    %vm1541 = vmand %vm1539, %vm1540
    %1542 = vst.msk [vmem:[#allocation10] sm:$0x3] %vm1541, %v1536
    // Predicated region
    $region38: #{node_only_global_forward.1} parent=1 // pred_check
      _
    $region39: #{node_only_global_forward.1} parent=1 // pred_check_branch
      %1544 = sbr.rel (0) target = $region41
    $region40: #{node_only_global_forward.1} parent=1 // pred_region
      %s1546 = ssub.s32 32, 32
      %1547 = vsyncadd [#allocation4], %s1546
      %s1549 = sshll.u32 [#allocation10], 4
      %s1550 = int_to_ptr.vmem [resolvable:$true] %s1549
      %1552 = dma.vmem_to_hbm [thread:$0]  %s1550, 32, %s5, [#allocation4]
    $region41: #{node_only_global_forward.1} parent=1 // pred_fallthru
      _
    // Predicated region
    $region42: #{node_only_global_forward.1} parent=1 // pred_check
      _
    $region43: #{node_only_global_forward.1} parent=1 // pred_check_branch
      %1554 = sbr.rel (0) target = $region45
    $region44: #{node_only_global_forward.1} parent=1 // pred_region
      %1555 = dma.done [#allocation4], 32
    $region45: #{node_only_global_forward.1} parent=1 // pred_fallthru
      _
    %1556 = vsyncpa [#allocation3], 1
    %1557 = vsyncpa [#allocation6], 1
    %1558 = vsyncpa [#allocation9], 1
    %1559 = vsyncpa [#allocation4], 1

</llo_original>
